<compile_context>
chip_gen: v7x
topology: tpu7x:2x2x1
jax: 0.10.0
libtpu: 0.0.40
codegen_flags: <defaults>
</compile_context>

<pallas_src>
import functools

import jax
import jax.numpy as jnp
from jax.experimental import pallas as pl
from jax.experimental.pallas import tpu as pltpu


def _round_up(v, m):
    return ((v + m - 1) // m) * m


def _choose_tile(b, d, itemsize, c):
    """Batch-tile rows from a VMEM budget (not a fixed constant)."""
    target = 20 * 1024 * 1024                       # stay well under 32 MiB scoped
    w_bytes = 2 * d * max(c, 128) * 4               # resident weight (dbuf, lane-padded)
    per_row = (2 * d * itemsize                     # x double-buffer
               + 2 * 128 * 4                        # (tile,1) int32 target, lane-padded, dbuf
               + 2 * 4                              # (1,tile) f32 -cos block, dbuf
               + 3 * 128 * 4)                       # allowance for (tile,128) f32 temps
    t = (target - w_bytes) // per_row
    t = max(256, min(int(t), 4096))
    if t >= b:
        return _round_up(b, 8)                      # single tile covers the batch
    return max(128, (t // 128) * 128)               # lane-aligned for the (1,tile) -cos block


def _p2sgrad_kernel(x_ref, t_ref, w_ref, psum_ref, ncos_ref, *, smooth, batch):
    """One batch tile of the P2SGrad forward.

    x_ref:    (TB, D)  features (native dtype, fed straight to the MXU)
    t_ref:    (TB, 1)  int32 target class ids
    w_ref:    (D,  C)  column-normalised class weights (resident)
    psum_ref: (1, 128) per-tile sum of squared error, lane-broadcast
    ncos_ref: (1, TB)  -cos_theta[:, 0] for this tile, lane-dense, f32
    """
    i = pl.program_id(0)
    tb = x_ref.shape[0]
    c = w_ref.shape[1]

    x = x_ref[...]                                                        # native dtype
    inner = jnp.dot(x, w_ref[...], preferred_element_type=jnp.float32)   # (TB, C) f32

    # 1/||x||: rsqrt goes to the EUP (free bundle slot); f32 upcast only here.
    sumsq = jnp.sum(x.astype(jnp.float32) ** 2, axis=-1, keepdims=True)  # (TB, 1)
    inv_norm = jax.lax.rsqrt(sumsq)
    cos = jnp.clip(inner * inv_norm, -1.0, 1.0)                          # (TB, C)

    # label-smoothed one-hot target (gather-by-compare; no gather op on TPU)
    cls = jax.lax.broadcasted_iota(jnp.int32, (tb, c), 1)
    onehot = (cls == t_ref[...]).astype(jnp.float32)
    label = onehot * (1.0 - smooth) + (smooth / c)
    diff = cos - label
    row_sq = jnp.sum(diff * diff, axis=-1, keepdims=True)                # (TB, 1)

    # Mask padded rows of the ragged last tile BEFORE the sublane reduction so
    # NaN/Inf from garbage rows cannot poison the partial; emit one per-tile
    # partial, lane-broadcast so the store is a single unmasked vst.
    rows = i * tb + jax.lax.broadcasted_iota(jnp.int32, (tb, 1), 0)
    masked = jnp.where(rows < batch, row_sq, 0.0)
    partial = jnp.sum(masked, axis=0, keepdims=True)                     # (1, 1)
    psum_ref[...] = jnp.broadcast_to(partial, (1, 128))

    # Lane-dense -cos_theta[:, 0]: sublane column -> lane row (XLU transpose).
    ncos_ref[...] = jnp.transpose(-cos[:, 0:1]).astype(ncos_ref.dtype)


def p2sgrad_loss(input_feat, target, weight, smooth=0.1):
    """JAX/Pallas equivalent of P2SGradLoss.forward(input_feat, target).

    input_feat: (B, D) features
    target:     (B,)   integer class ids
    weight:     (D, C) raw parameter (renormed here, like the module does)

    Returns (loss, -cos_theta[:, 0]) exactly like the PyTorch module.
    """
    x = jnp.asarray(input_feat)
    b, d = x.shape
    w = jnp.asarray(weight, jnp.float32)
    c = w.shape[1]

    # weight.renorm(2, 1, 1e-05).mul(100000.0): columns with norm > 1e-5 end up
    # L2-normalised; tiny columns are just scaled by 1e5.  Tiny one-off op.
    col_norm = jnp.sqrt(jnp.sum(w * w, axis=0, keepdims=True))
    scale = jnp.where(col_norm > 1e-5, 1e-5 / col_norm, 1.0) * 1e5
    w_n = (w * scale).astype(x.dtype)        # match x dtype so the MXU sees one dtype

    t = jnp.asarray(target).astype(jnp.int32).reshape(b, 1)

    itemsize = jnp.dtype(x.dtype).itemsize
    tile = _choose_tile(b, d, itemsize, c)
    num_tiles = pl.cdiv(b, tile)

    # NOTE: the weight spec has a constant index_map (fetched once).  If VMEM
    # ever gets tight (v7x, large D), pipeline_mode=pl.Buffered(1) on it saves
    # one lane-padded buffer; kernel is HBM-bound on x so no MXU tuning needed.
    psum, neg_cos = pl.pallas_call(
        functools.partial(_p2sgrad_kernel, smooth=float(smooth), batch=b),
        out_shape=(
            jax.ShapeDtypeStruct((1, num_tiles * 128), jnp.float32),   # per-tile SSE partials
            jax.ShapeDtypeStruct((1, num_tiles * tile), jnp.float32),  # -cos_theta[:, 0]
        ),
        grid_spec=pltpu.PrefetchScalarGridSpec(
            num_scalar_prefetch=0,
            grid=(num_tiles,),
            in_specs=[
                pl.BlockSpec((tile, d), lambda i: (i, 0)),   # x tile (lane-dense, read once)
                pl.BlockSpec((tile, 1), lambda i: (i, 0)),   # target tile
                pl.BlockSpec((d, c), lambda i: (0, 0)),      # weight (resident)
            ],
            out_specs=[
                pl.BlockSpec((1, 128), lambda i: (0, i)),    # per-tile partial
                pl.BlockSpec((1, tile), lambda i: (0, i)),   # lane-dense -cos row
            ],
        ),
        compiler_params=pltpu.CompilerParams(
            dimension_semantics=("parallel",),
            vmem_limit_bytes=32 * 1024 * 1024,
        ),
    )(x, t, w_n)

    # nn.MSELoss default reduction='mean': mean over all B*C elements.
    loss = jnp.sum(psum.reshape(num_tiles, 128)[:, 0]) / jnp.float32(b * c)
    neg_cos0 = neg_cos.reshape(-1)[:b]
    return loss, neg_cos0


def _reference(input_feat, target, weight, smooth=0.1):
    """Pure-JAX reference mirroring the PyTorch forward, for validation."""
    x = jnp.asarray(input_feat, jnp.float32)
    w = jnp.asarray(weight, jnp.float32)
    col_norm = jnp.sqrt(jnp.sum(w * w, axis=0, keepdims=True))
    scale = jnp.where(col_norm > 1e-5, 1e-5 / col_norm, 1.0) * 1e5
    w_n = w * scale

    x_mod = jnp.sqrt(jnp.sum(x * x, axis=1, keepdims=True))
    cos = jnp.clip((x @ w_n) / x_mod, -1.0, 1.0)

    c = w.shape[1]
    onehot = jax.nn.one_hot(jnp.asarray(target), c, dtype=jnp.float32)
    label = onehot * (1.0 - smooth) + smooth / c
    loss = jnp.mean((cos - label) ** 2)
    return loss, -cos[:, 0]


if __name__ == "__main__":
    key = jax.random.PRNGKey(0)
    k1, k2, k3 = jax.random.split(key, 3)

    # Small shapes consistent with the module's docstring usage example.
    batch, in_dim, class_num = 64, 32, 5
    smooth = 0.1

    x = jax.random.normal(k1, (batch, in_dim), dtype=jnp.float32)
    target = jax.random.randint(k2, (batch,), 0, class_num, dtype=jnp.int32)
    weight = jax.random.uniform(k3, (in_dim, class_num), jnp.float32,
                                minval=-1.0, maxval=1.0)

    loss, neg_cos0 = p2sgrad_loss(x, target, weight, smooth=smooth)
    loss = jax.block_until_ready(loss)
    neg_cos0 = jax.block_until_ready(neg_cos0)

    ref_loss, ref_neg = _reference(x, target, weight, smooth)
    assert jnp.allclose(loss, ref_loss, rtol=5e-3, atol=1e-4), (loss, ref_loss)
    assert jnp.allclose(neg_cos0, ref_neg, rtol=5e-3, atol=1e-4), "neg_cos mismatch"

    print("KERNEL_OK")
</pallas_src>

<mosaic_0001>
module attributes {stable_mosaic.version = 11 : i64} {
  func.func @_p2sgrad_kernel(%arg0: i32, %arg1: memref<64x32xf32, #tpu.memory_space<vmem>>, %arg2: memref<64x1xi32, #tpu.memory_space<vmem>>, %arg3: memref<32x5xf32, #tpu.memory_space<vmem>>, %arg4: memref<1x128xf32, #tpu.memory_space<vmem>>, %arg5: memref<1x64xf32, #tpu.memory_space<vmem>>) attributes {dimension_semantics = [#tpu.dimension_semantics<parallel>], iteration_bounds = array<i64: 1>, scalar_prefetch = 0 : i64, scratch_operands = 0 : i64, tpu.core_type = #tpu.core_type<tc>, window_params = [{transform_indices = @transform_0, window_bounds = array<i64: 64, 32>}, {transform_indices = @transform_1, window_bounds = array<i64: 64, 1>}, {pipeline_mode = #tpu.pipeline_mode<synchronous>, transform_indices = @transform_2, window_bounds = array<i64: 32, 5>}, {transform_indices = @transform_3, window_bounds = array<i64: 1, 128>}, {transform_indices = @transform_4, window_bounds = array<i64: 1, 64>}]} {
    %c0 = arith.constant 0 : index
    %c0_0 = arith.constant 0 : index
    %0 = vector.load %arg1[%c0, %c0_0] : memref<64x32xf32, #tpu.memory_space<vmem>>, vector<64x32xf32>
    %c0_1 = arith.constant 0 : index
    %c0_2 = arith.constant 0 : index
    %1 = vector.load %arg3[%c0_1, %c0_2] : memref<32x5xf32, #tpu.memory_space<vmem>>, vector<32x5xf32>
    %cst = arith.constant dense<0.000000e+00> : vector<64x5xf32>
    %2 = tpu.matmul %0, %1, %cst {dimension_numbers = #tpu.dot_dimension_numbers<[1], [0], [0], [1], [0, 0, 1, 1], [], []>} : vector<64x32xf32>, vector<32x5xf32>, vector<64x5xf32> -> vector<64x5xf32>
    %3 = arith.mulf %0, %0 : vector<64x32xf32>
    %cst_3 = arith.constant dense<0.000000e+00> : vector<64xf32>
    %4 = vector.multi_reduction <add>, %3, %cst_3 [1] : vector<64x32xf32> to vector<64xf32>
    %5 = vector.shape_cast %4 : vector<64xf32> to vector<64x1xf32>
    %6 = math.rsqrt %5 : vector<64x1xf32>
    %7 = vector.broadcast %6 : vector<64x1xf32> to vector<64x5xf32>
    %8 = arith.mulf %2, %7 : vector<64x5xf32>
    %cst_4 = arith.constant -1.000000e+00 : f32
    %cst_5 = arith.constant 1.000000e+00 : f32
    %9 = vector.broadcast %cst_4 : f32 to vector<64x5xf32>
    %10 = arith.maximumf %9, %8 : vector<64x5xf32>
    %11 = vector.broadcast %cst_5 : f32 to vector<64x5xf32>
    %12 = arith.minimumf %11, %10 : vector<64x5xf32>
    %13 = tpu.iota {dimensions = array<i32: 1>} : vector<64x5xi32>
    %c0_6 = arith.constant 0 : index
    %c0_7 = arith.constant 0 : index
    %14 = vector.load %arg2[%c0_6, %c0_7] : memref<64x1xi32, #tpu.memory_space<vmem>>, vector<64x1xi32>
    %15 = vector.broadcast %14 : vector<64x1xi32> to vector<64x5xi32>
    %16 = arith.cmpi eq, %13, %15 : vector<64x5xi32>
    %17 = arith.extui %16 : vector<64x5xi1> to vector<64x5xi32>
    %18 = arith.sitofp %17 : vector<64x5xi32> to vector<64x5xf32>
    %cst_8 = arith.constant 0.899999976 : f32
    %19 = vector.broadcast %cst_8 : f32 to vector<64x5xf32>
    %20 = arith.mulf %18, %19 : vector<64x5xf32>
    %cst_9 = arith.constant 2.000000e-02 : f32
    %21 = vector.broadcast %cst_9 : f32 to vector<64x5xf32>
    %22 = arith.addf %20, %21 : vector<64x5xf32>
    %23 = arith.subf %12, %22 : vector<64x5xf32>
    %24 = arith.mulf %23, %23 : vector<64x5xf32>
    %cst_10 = arith.constant dense<0.000000e+00> : vector<64xf32>
    %25 = vector.multi_reduction <add>, %24, %cst_10 [1] : vector<64x5xf32> to vector<64xf32>
    %26 = vector.shape_cast %25 : vector<64xf32> to vector<64x1xf32>
    %c64_i32 = arith.constant 64 : i32
    %27 = arith.muli %arg0, %c64_i32 : i32
    %28 = tpu.iota {dimensions = array<i32: 0>} : vector<64x1xi32>
    %29 = vector.broadcast %27 : i32 to vector<64x1xi32>
    %30 = arith.addi %29, %28 : vector<64x1xi32>
    %c64_i32_11 = arith.constant 64 : i32
    %31 = vector.broadcast %c64_i32_11 : i32 to vector<64x1xi32>
    %32 = arith.cmpi slt, %30, %31 : vector<64x1xi32>
    %cst_12 = arith.constant 0.000000e+00 : f32
    %33 = vector.broadcast %cst_12 : f32 to vector<64x1xf32>
    %34 = arith.select %32, %26, %33 : vector<64x1xi1>, vector<64x1xf32>
    %cst_13 = arith.constant dense<0.000000e+00> : vector<1xf32>
    %35 = vector.multi_reduction <add>, %34, %cst_13 [0] : vector<64x1xf32> to vector<1xf32>
    %36 = vector.shape_cast %35 : vector<1xf32> to vector<1x1xf32>
    %37 = vector.shape_cast %36 : vector<1x1xf32> to vector<1x1xf32>
    %38 = vector.broadcast %37 : vector<1x1xf32> to vector<1x128xf32>
    %c0_14 = arith.constant 0 : index
    %c0_15 = arith.constant 0 : index
    %39 = vector.load %arg4[%c0_14, %c0_15] : memref<1x128xf32, #tpu.memory_space<vmem>>, vector<1x128xf32>
    tpu.vector_store %arg4[%c0_14, %c0_15], %38 {strides = array<i32>} : memref<1x128xf32, #tpu.memory_space<vmem>>, vector<1x128xf32>,
    %40 = vector.extract_strided_slice %12 {offsets = [0, 0], sizes = [64, 1], strides = [1, 1]} : vector<64x5xf32> to vector<64x1xf32>
    %cst_16 = arith.constant 0.000000e+00 : f32
    %41 = vector.broadcast %cst_16 : f32 to vector<64x1xf32>
    %42 = arith.subf %41, %40 : vector<64x1xf32>
    %43 = tpu.transpose %42, [1, 0] : vector<64x1xf32> -> vector<1x64xf32>
    %c0_17 = arith.constant 0 : index
    %c0_18 = arith.constant 0 : index
    %44 = vector.load %arg5[%c0_17, %c0_18] : memref<1x64xf32, #tpu.memory_space<vmem>>, vector<1x64xf32>
    tpu.vector_store %arg5[%c0_17, %c0_18], %43 {strides = array<i32>} : memref<1x64xf32, #tpu.memory_space<vmem>>, vector<1x64xf32>,
    return
  }
  func.func @transform_0(%arg0: i32) -> (i32, i32) {
    %c0_i32 = arith.constant 0 : i32
    %c0_i32_0 = arith.constant 0 : i32
    return %arg0, %c0_i32 : i32, i32
  }
  func.func @transform_1(%arg0: i32) -> (i32, i32) {
    %c0_i32 = arith.constant 0 : i32
    %c0_i32_0 = arith.constant 0 : i32
    return %arg0, %c0_i32 : i32, i32
  }
  func.func @transform_2(%arg0: i32) -> (i32, i32) {
    %c0_i32 = arith.constant 0 : i32
    %c0_i32_0 = arith.constant 0 : i32
    %c0_i32_1 = arith.constant 0 : i32
    return %c0_i32, %c0_i32_0 : i32, i32
  }
  func.func @transform_3(%arg0: i32) -> (i32, i32) {
    %c0_i32 = arith.constant 0 : i32
    %c0_i32_0 = arith.constant 0 : i32
    return %c0_i32, %arg0 : i32, i32
  }
  func.func @transform_4(%arg0: i32) -> (i32, i32) {
    %c0_i32 = arith.constant 0 : i32
    %c0_i32_0 = arith.constant 0 : i32
    return %c0_i32, %arg0 : i32, i32
  }
}

</mosaic_0001>

<llo_original>
// kernel: tpu_custom_call.1
$region0: #{tpu_custom_call.1}
  #allocation0 [shape = 'u32[]', space=smem, size = 0x4, offset = 0x4, fixed_abs, tag = 'smem constant byte address 0x4 - core index']
  #allocation1 [shape = 'u32[144,128]{1,0:T(1,128)}', space=vmem, size = 0x12000, scoped, tag = 'internal scratch']
  %s0 = inlined_call_operand.vmem [shape: f32[64,32], index: 0, kind: input, shape index: {}]
  %s1 = inlined_call_operand.vmem [shape: s32[64,1], index: 1, kind: input, shape index: {}]
  %s2 = inlined_call_operand.vmem [shape: f32[32,5], index: 2, kind: input, shape index: {}]
  %s3 = inlined_call_operand.hbm [shape: f32[1,128], index: 3, kind: output, shape index: {0}]
  %s4 = inlined_call_operand.hbm [shape: f32[1,64], index: 4, kind: output, shape index: {1}]
  %5 = xla_tuple %s3, %s4
  %s6 = sld [smem:[#allocation0]]
  $region30: #{tpu_custom_call.1} parent=0
    _
  %s8 = ssub.s32 1, %s6
  %s9 = scalar_select 0, %s8, %s6
  $region1: #{tpu_custom_call.1} parent=0
    #allocation2 [shape = 'u8[512]{0}', space=vmem, size = 0x400, scoped, tag = 'output window, operand 0, single buffered']
    #allocation3 [shape = 's32[1]{0}', space=sflag, size = 0x4, scoped, tag = 'scoped memory for tpu_custom_call.1']
    #allocation4 [shape = 'u8[512]{0}', space=vmem, size = 0x400, scoped, tag = 'output window, operand 1, single buffered']
    #allocation5 [shape = 's32[1]{0}', space=sflag, size = 0x4, scoped, tag = 'scoped memory for tpu_custom_call.1']
    %10 = vsyncpa [#allocation3], 0
    %11 = vsyncpa [#allocation5], 0
    // Predicated region
    $region2: #{tpu_custom_call.1} parent=1 // pred_check
      _
    $region3: #{tpu_custom_call.1} parent=1 // pred_check_branch
      %13 = sbr.rel (0) target = $region5
    $region4: #{tpu_custom_call.1} parent=1 // pred_region
      _
    $region5: #{tpu_custom_call.1} parent=1 // pred_fallthru
      _
    // Predicated region
    $region6: #{tpu_custom_call.1} parent=1 // pred_check
      _
    $region7: #{tpu_custom_call.1} parent=1 // pred_check_branch
      %15 = sbr.rel (0) target = $region9
    $region8: #{tpu_custom_call.1} parent=1 // pred_region
      _
    $region9: #{tpu_custom_call.1} parent=1 // pred_fallthru
      _
    // Predicated region
    $region10: #{tpu_custom_call.1} parent=1 // pred_check
      _
    $region11: #{tpu_custom_call.1} parent=1 // pred_check_branch
      %17 = sbr.rel (0) target = $region13
    $region12: #{tpu_custom_call.1} parent=1 // pred_region
      _
    $region13: #{tpu_custom_call.1} parent=1 // pred_fallthru
      _
    %v18 = vld [vmem:[%s0] sm:$0xff]
    %v19 = vld [vmem:[%s0 + $0x8] sm:$0xff]
    %v20 = vld [vmem:[%s0 + $0x10] sm:$0xff]
    %v21 = vld [vmem:[%s0 + $0x18] sm:$0xff]
    %v22 = vld [vmem:[%s0 + $0x20] sm:$0xff]
    %v23 = vld [vmem:[%s0 + $0x28] sm:$0xff]
    %v24 = vld [vmem:[%s0 + $0x30] sm:$0xff]
    %v25 = vld [vmem:[%s0 + $0x38] sm:$0xff]
    %v26 = vld [vmem:[%s2] sm:$0xff]
    %v27 = vld [vmem:[%s2 + $0x8] sm:$0xff]
    %v28 = vld [vmem:[%s2 + $0x10] sm:$0xff]
    %v29 = vld [vmem:[%s2 + $0x18] sm:$0xff]
    %vm30 = vcmask 261120
    %v32 = vsel %vm30, %v18, 0
    %v35 = vsel %vm30, %v19, 0
    %v38 = vsel %vm30, %v20, 0
    %v41 = vsel %vm30, %v21, 0
    %v44 = vsel %vm30, %v22, 0
    %v47 = vsel %vm30, %v23, 0
    %v50 = vsel %vm30, %v24, 0
    %v53 = vsel %vm30, %v25, 0
    %55 = vmatprep.subr.mxu0 0.0
    %56 = vmatpush1.msra.mxu0 %v26
    %57 = vmatprep.subr.mxu0 0.0
    %58 = vmatpush1.msra.mxu0 %v27
    %59 = vmatprep.subr.mxu0 0.0
    %60 = vmatpush1.msra.mxu0 %v28
    %61 = vmatprep.subr.mxu0 0.0
    %62 = vmatpush1.msra.mxu0 %v29
    %63 = vmatprep.subr.mxu0 0.0
    %64 = vmatpush1.msra.mxu0 0.0
    %65 = vmatprep.subr.mxu0 0.0
    %66 = vmatpush1.msra.mxu0 0.0
    %67 = vmatprep.subr.mxu0 0.0
    %68 = vmatpush1.msra.mxu0 0.0
    %69 = vmatprep.subr.mxu0 0.0
    %70 = vmatpush1.msra.mxu0 0.0
    %71 = vmatprep.subr.mxu0 0.0
    %72 = vmatpush1.msra.mxu0 0.0
    %73 = vmatprep.subr.mxu0 0.0
    %74 = vmatpush1.msra.mxu0 0.0
    %75 = vmatprep.subr.mxu0 0.0
    %76 = vmatpush1.msra.mxu0 0.0
    %77 = vmatprep.subr.mxu0 0.0
    %78 = vmatpush1.msra.mxu0 0.0
    %79 = vmatprep.subr.mxu0 0.0
    %80 = vmatpush1.msra.mxu0 0.0
    %81 = vmatprep.subr.mxu0 0.0
    %82 = vmatpush1.msra.mxu0 0.0
    %83 = vmatprep.subr.mxu0 0.0
    %84 = vmatpush1.msra.mxu0 0.0
    %85 = vmatprep.subr.mxu0 0.0
    %86 = vmatpush1.msra.mxu0 0.0
    %87 = vmatprep.subr.mxu0 0.0
    %88 = vmatpush1.msra.mxu0 0.0
    %89 = vmatprep.subr.mxu0 0.0
    %90 = vmatpush1.msra.mxu0 0.0
    %91 = vmatprep.subr.mxu0 0.0
    %92 = vmatpush1.msra.mxu0 0.0
    %93 = vmatprep.subr.mxu0 0.0
    %94 = vmatpush1.msra.mxu0 0.0
    %95 = vmatprep.subr.mxu0 0.0
    %96 = vmatpush1.msra.mxu0 0.0
    %97 = vmatprep.subr.mxu0 0.0
    %98 = vmatpush1.msra.mxu0 0.0
    %99 = vmatprep.subr.mxu0 0.0
    %100 = vmatpush1.msra.mxu0 0.0
    %101 = vmatprep.subr.mxu0 0.0
    %102 = vmatpush1.msra.mxu0 0.0
    %103 = vmatprep.subr.mxu0 0.0
    %104 = vmatpush1.msra.mxu0 0.0
    %105 = vmatprep.subr.mxu0 0.0
    %106 = vmatpush1.msra.mxu0 0.0
    %107 = vmatprep.subr.mxu0 0.0
    %108 = vmatpush1.msra.mxu0 0.0
    %109 = vmatprep.subr.mxu0 0.0
    %110 = vmatpush1.msra.mxu0 0.0
    %111 = vmatprep.subr.mxu0 0.0
    %112 = vmatpush1.msra.mxu0 0.0
    %113 = vmatprep.subr.mxu0 0.0
    %114 = vmatpush1.msra.mxu0 0.0
    %115 = vmatprep.subr.mxu0 0.0
    %116 = vmatpush1.msra.mxu0 0.0
    %117 = vmatprep.subr.mxu0 0.0
    %118 = vmatpush1.msra.mxu0 0.0
    %119 = vmatprep.mubr.f32.mxu0 0.0
    %120 = vmatmul.mubr.f32.gmra.mrb[0].mxu0 %v32
    %v121 = vpop.f32.mrb[0].mxu0
    %v122 = vadd.f32 0.0, %v121
    %v123 = vpop.f32.mrb[0].mxu0
    %124 = vmatprep.mubr.f32.mxu0 0.0
    %125 = vmatmul.mubr.f32.gmra.mrb[0].mxu0 %v35
    %v126 = vpop.f32.mrb[0].mxu0
    %v127 = vadd.f32 0.0, %v126
    %v128 = vpop.f32.mrb[0].mxu0
    %129 = vmatprep.mubr.f32.mxu0 0.0
    %130 = vmatmul.mubr.f32.gmra.mrb[0].mxu0 %v38
    %v131 = vpop.f32.mrb[0].mxu0
    %v132 = vadd.f32 0.0, %v131
    %v133 = vpop.f32.mrb[0].mxu0
    %134 = vmatprep.mubr.f32.mxu0 0.0
    %135 = vmatmul.mubr.f32.gmra.mrb[0].mxu0 %v41
    %v136 = vpop.f32.mrb[0].mxu0
    %v137 = vadd.f32 0.0, %v136
    %v138 = vpop.f32.mrb[0].mxu0
    %139 = vmatprep.mubr.f32.mxu0 0.0
    %140 = vmatmul.mubr.f32.gmra.mrb[0].mxu0 %v44
    %v141 = vpop.f32.mrb[0].mxu0
    %v142 = vadd.f32 0.0, %v141
    %v143 = vpop.f32.mrb[0].mxu0
    %144 = vmatprep.mubr.f32.mxu0 0.0
    %145 = vmatmul.mubr.f32.gmra.mrb[0].mxu0 %v47
    %v146 = vpop.f32.mrb[0].mxu0
    %v147 = vadd.f32 0.0, %v146
    %v148 = vpop.f32.mrb[0].mxu0
    %149 = vmatprep.mubr.f32.mxu0 0.0
    %150 = vmatmul.mubr.f32.gmra.mrb[0].mxu0 %v50
    %v151 = vpop.f32.mrb[0].mxu0
    %v152 = vadd.f32 0.0, %v151
    %v153 = vpop.f32.mrb[0].mxu0
    %154 = vmatprep.mubr.f32.mxu0 0.0
    %155 = vmatmul.mubr.f32.gmra.mrb[0].mxu0 %v53
    %v156 = vpop.f32.mrb[0].mxu0
    %v157 = vadd.f32 0.0, %v156
    %v158 = vpop.f32.mrb[0].mxu0
    %159 = vdwg.mxu0
    %v160 = vmul.f32 %v18, %v18
    %v161 = vmul.f32 %v19, %v19
    %v162 = vmul.f32 %v20, %v20
    %v163 = vmul.f32 %v21, %v21
    %v164 = vmul.f32 %v22, %v22
    %v165 = vmul.f32 %v23, %v23
    %v166 = vmul.f32 %v24, %v24
    %v167 = vmul.f32 %v25, %v25
    %v168 = vsel %vm30, %v160, 0.0
    %169 = vadd.xlane.f32.xlu0 %v168
    %v170 = vpop.xlane.xlu0 %169
    %v171 = vsel %vm30, %v161, 0.0
    %172 = vadd.xlane.f32.xlu0 %v171
    %v173 = vpop.xlane.xlu0 %172
    %v174 = vsel %vm30, %v162, 0.0
    %175 = vadd.xlane.f32.xlu0 %v174
    %v176 = vpop.xlane.xlu0 %175
    %v177 = vsel %vm30, %v163, 0.0
    %178 = vadd.xlane.f32.xlu0 %v177
    %v179 = vpop.xlane.xlu0 %178
    %v180 = vsel %vm30, %v164, 0.0
    %181 = vadd.xlane.f32.xlu0 %v180
    %v182 = vpop.xlane.xlu0 %181
    %v183 = vsel %vm30, %v165, 0.0
    %184 = vadd.xlane.f32.xlu0 %v183
    %v185 = vpop.xlane.xlu0 %184
    %v186 = vsel %vm30, %v166, 0.0
    %187 = vadd.xlane.f32.xlu0 %v186
    %v188 = vpop.xlane.xlu0 %187
    %v189 = vsel %vm30, %v167, 0.0
    %190 = vadd.xlane.f32.xlu0 %v189
    %v191 = vpop.xlane.xlu0 %190
    %v192 = vrsqrt.pop %v170
    %v193 = vrsqrt.pop %v173
    %v194 = vrsqrt.pop %v176
    %v195 = vrsqrt.pop %v179
    %v196 = vrsqrt.pop %v182
    %v197 = vrsqrt.pop %v185
    %v198 = vrsqrt.pop %v188
    %v199 = vrsqrt.pop %v191
    %v200 = vmul.f32 %v122, %v192
    %v201 = vmul.f32 %v127, %v193
    %v202 = vmul.f32 %v132, %v194
    %v203 = vmul.f32 %v137, %v195
    %v204 = vmul.f32 %v142, %v196
    %v205 = vmul.f32 %v147, %v197
    %v206 = vmul.f32 %v152, %v198
    %v207 = vmul.f32 %v157, %v199
    %v208 = vmax.f32 %v200, -1.0
    %v209 = vmax.f32 %v201, -1.0
    %v210 = vmax.f32 %v202, -1.0
    %v211 = vmax.f32 %v203, -1.0
    %v212 = vmax.f32 %v204, -1.0
    %v213 = vmax.f32 %v205, -1.0
    %v214 = vmax.f32 %v206, -1.0
    %v215 = vmax.f32 %v207, -1.0
    %v216 = vmin.f32 %v208, 1.0
    %v217 = vmin.f32 %v209, 1.0
    %v218 = vmin.f32 %v210, 1.0
    %v219 = vmin.f32 %v211, 1.0
    %v220 = vmin.f32 %v212, 1.0
    %v221 = vmin.f32 %v213, 1.0
    %v222 = vmin.f32 %v214, 1.0
    %v223 = vmin.f32 %v215, 1.0
    %v224 = vlaneseq
    %v225 = vand.u32 %v224, 127
    %v226 = vld [vmem:[%s1] sm:$0xff]
    %v227 = vld [vmem:[%s1 + $0x8] sm:$0xff]
    %v228 = vld [vmem:[%s1 + $0x10] sm:$0xff]
    %v229 = vld [vmem:[%s1 + $0x18] sm:$0xff]
    %v230 = vld [vmem:[%s1 + $0x20] sm:$0xff]
    %v231 = vld [vmem:[%s1 + $0x28] sm:$0xff]
    %v232 = vld [vmem:[%s1 + $0x30] sm:$0xff]
    %v233 = vld [vmem:[%s1 + $0x38] sm:$0xff]
    %234 = vset.pattern.permute.xlu0 0
    %235 = vperm.xlu0 %234, %v226
    %v236 = vpop.permute.xlu0 %235
    %237 = vset.pattern.permute.xlu0 0
    %238 = vperm.xlu0 %237, %v227
    %v239 = vpop.permute.xlu0 %238
    %240 = vset.pattern.permute.xlu0 0
    %241 = vperm.xlu0 %240, %v228
    %v242 = vpop.permute.xlu0 %241
    %243 = vset.pattern.permute.xlu0 0
    %244 = vperm.xlu0 %243, %v229
    %v245 = vpop.permute.xlu0 %244
    %246 = vset.pattern.permute.xlu0 0
    %247 = vperm.xlu0 %246, %v230
    %v248 = vpop.permute.xlu0 %247
    %249 = vset.pattern.permute.xlu0 0
    %250 = vperm.xlu0 %249, %v231
    %v251 = vpop.permute.xlu0 %250
    %252 = vset.pattern.permute.xlu0 0
    %253 = vperm.xlu0 %252, %v232
    %v254 = vpop.permute.xlu0 %253
    %255 = vset.pattern.permute.xlu0 0
    %256 = vperm.xlu0 %255, %v233
    %v257 = vpop.permute.xlu0 %256
    %vm258 = vcmp.eq.s32.totalorder %v225, %v236
    %vm259 = vcmp.eq.s32.totalorder %v225, %v239
    %vm260 = vcmp.eq.s32.totalorder %v225, %v242
    %vm261 = vcmp.eq.s32.totalorder %v225, %v245
    %vm262 = vcmp.eq.s32.totalorder %v225, %v248
    %vm263 = vcmp.eq.s32.totalorder %v225, %v251
    %vm264 = vcmp.eq.s32.totalorder %v225, %v254
    %vm265 = vcmp.eq.s32.totalorder %v225, %v257
    %v266 = vsel %vm258, 1, 0
    %v267 = vsel %vm259, 1, 0
    %v268 = vsel %vm260, 1, 0
    %v269 = vsel %vm261, 1, 0
    %v270 = vsel %vm262, 1, 0
    %v271 = vsel %vm263, 1, 0
    %v272 = vsel %vm264, 1, 0
    %v273 = vsel %vm265, 1, 0
    %v274 = vcvt.s32.f32 %v266
    %v275 = vcvt.s32.f32 %v267
    %v276 = vcvt.s32.f32 %v268
    %v277 = vcvt.s32.f32 %v269
    %v278 = vcvt.s32.f32 %v270
    %v279 = vcvt.s32.f32 %v271
    %v280 = vcvt.s32.f32 %v272
    %v281 = vcvt.s32.f32 %v273
    %v282 = vmul.f32 %v274, 0.9
    %v283 = vmul.f32 %v275, 0.9
    %v284 = vmul.f32 %v276, 0.9
    %v285 = vmul.f32 %v277, 0.9
    %v286 = vmul.f32 %v278, 0.9
    %v287 = vmul.f32 %v279, 0.9
    %v288 = vmul.f32 %v280, 0.9
    %v289 = vmul.f32 %v281, 0.9
    %v290 = vadd.f32 %v282, 0.02
    %v291 = vadd.f32 %v283, 0.02
    %v292 = vadd.f32 %v284, 0.02
    %v293 = vadd.f32 %v285, 0.02
    %v294 = vadd.f32 %v286, 0.02
    %v295 = vadd.f32 %v287, 0.02
    %v296 = vadd.f32 %v288, 0.02
    %v297 = vadd.f32 %v289, 0.02
    %v298 = vsub.f32 %v216, %v290
    %v299 = vsub.f32 %v217, %v291
    %v300 = vsub.f32 %v218, %v292
    %v301 = vsub.f32 %v219, %v293
    %v302 = vsub.f32 %v220, %v294
    %v303 = vsub.f32 %v221, %v295
    %v304 = vsub.f32 %v222, %v296
    %v305 = vsub.f32 %v223, %v297
    %v306 = vmul.f32 %v298, %v298
    %v307 = vmul.f32 %v299, %v299
    %v308 = vmul.f32 %v300, %v300
    %v309 = vmul.f32 %v301, %v301
    %v310 = vmul.f32 %v302, %v302
    %v311 = vmul.f32 %v303, %v303
    %v312 = vmul.f32 %v304, %v304
    %v313 = vmul.f32 %v305, %v305
    %vm314 = vcmask 39936
    %v315 = vsel %vm314, %v306, 0.0
    %316 = vadd.xlane.f32.xlu0 %v315
    %v317 = vpop.xlane.xlu0 %316
    %v318 = vsel %vm314, %v307, 0.0
    %319 = vadd.xlane.f32.xlu0 %v318
    %v320 = vpop.xlane.xlu0 %319
    %v321 = vsel %vm314, %v308, 0.0
    %322 = vadd.xlane.f32.xlu0 %v321
    %v323 = vpop.xlane.xlu0 %322
    %v324 = vsel %vm314, %v309, 0.0
    %325 = vadd.xlane.f32.xlu0 %v324
    %v326 = vpop.xlane.xlu0 %325
    %v327 = vsel %vm314, %v310, 0.0
    %328 = vadd.xlane.f32.xlu0 %v327
    %v329 = vpop.xlane.xlu0 %328
    %v330 = vsel %vm314, %v311, 0.0
    %331 = vadd.xlane.f32.xlu0 %v330
    %v332 = vpop.xlane.xlu0 %331
    %v333 = vsel %vm314, %v312, 0.0
    %334 = vadd.xlane.f32.xlu0 %v333
    %v335 = vpop.xlane.xlu0 %334
    %v336 = vsel %vm314, %v313, 0.0
    %337 = vadd.xlane.f32.xlu0 %v336
    %v338 = vpop.xlane.xlu0 %337
    %s339 = smul.u32 0, 64
    %v340 = vlaneseq
    %v341 = vshrl.u32 %v340, 7
    %v342 = vadd.s32 %v341, 8
    %v343 = vadd.s32 %v341, 16
    %v344 = vadd.s32 %v341, 24
    %v345 = vadd.s32 %v341, 32
    %v346 = vadd.s32 %v341, 40
    %v347 = vadd.s32 %v341, 48
    %v348 = vadd.s32 %v341, 56
    %v349 = vstv %s339
    %v350 = vadd.s32 %v349, %v341
    %v351 = vadd.s32 %v349, %v342
    %v352 = vadd.s32 %v349, %v343
    %v353 = vadd.s32 %v349, %v344
    %v354 = vadd.s32 %v349, %v345
    %v355 = vadd.s32 %v349, %v346
    %v356 = vadd.s32 %v349, %v347
    %v357 = vadd.s32 %v349, %v348
    %vm358 = vcmp.lt.s32.totalorder %v350, 64
    %vm359 = vcmp.lt.s32.totalorder %v351, 64
    %vm360 = vcmp.lt.s32.totalorder %v352, 64
    %vm361 = vcmp.lt.s32.totalorder %v353, 64
    %vm362 = vcmp.lt.s32.totalorder %v354, 64
    %vm363 = vcmp.lt.s32.totalorder %v355, 64
    %vm364 = vcmp.lt.s32.totalorder %v356, 64
    %vm365 = vcmp.lt.s32.totalorder %v357, 64
    %v366 = vsel %vm358, %v317, 0.0
    %v367 = vsel %vm359, %v320, 0.0
    %v368 = vsel %vm360, %v323, 0.0
    %v369 = vsel %vm361, %v326, 0.0
    %v370 = vsel %vm362, %v329, 0.0
    %v371 = vsel %vm363, %v332, 0.0
    %v372 = vsel %vm364, %v335, 0.0
    %v373 = vsel %vm365, %v338, 0.0
    %v374 = vadd.f32 %v366, %v367
    %v375 = vadd.f32 %v374, %v368
    %v376 = vadd.f32 %v375, %v369
    %v377 = vadd.f32 %v376, %v370
    %v378 = vadd.f32 %v377, %v371
    %v379 = vadd.f32 %v378, %v372
    %v380 = vadd.f32 %v379, %v373
    %v381 = vrot.slane %v380, 4
    %v382 = vadd.f32 %v380, %v381
    %v383 = vrot.slane %v382, 2
    %v384 = vadd.f32 %v382, %v383
    %v385 = vrot.slane %v384, 1
    %v386 = vadd.f32 %v384, %v385
    %387 = vst [vmem:[#allocation2] sm:$0x1] %v386
    %v388 = vsub.f32 0.0, %v216
    %v389 = vsub.f32 0.0, %v217
    %v390 = vsub.f32 0.0, %v218
    %v391 = vsub.f32 0.0, %v219
    %v392 = vsub.f32 0.0, %v220
    %v393 = vsub.f32 0.0, %v221
    %v394 = vsub.f32 0.0, %v222
    %v395 = vsub.f32 0.0, %v223
    %396 = vxpose.xlu0.b32.start [1/16] %v388, 128
    %397 = vxpose.xlu0.b32.cont [2/16] %v389, 128
    %398 = vxpose.xlu0.b32.cont [3/16] %v390, 128
    %399 = vxpose.xlu0.b32.cont [4/16] %v391, 128
    %400 = vxpose.xlu0.b32.cont [5/16] %v392, 128
    %401 = vxpose.xlu0.b32.cont [6/16] %v393, 128
    %402 = vxpose.xlu0.b32.cont [7/16] %v394, 128
    %403 = vxpose.xlu0.b32.cont [8/16] %v395, 128
    %404 = vxpose.xlu0.b32.cont [9/16] 0.0, 128
    %405 = vxpose.xlu0.b32.cont [10/16] 0.0, 128
    %406 = vxpose.xlu0.b32.cont [11/16] 0.0, 128
    %407 = vxpose.xlu0.b32.cont [12/16] 0.0, 128
    %408 = vxpose.xlu0.b32.cont [13/16] 0.0, 128
    %409 = vxpose.xlu0.b32.cont [14/16] 0.0, 128
    %410 = vxpose.xlu0.b32.cont [15/16] 0.0, 128
    %411 = vxpose.xlu0.b32.end [16/16] 0.0, 128
    %v412 = vpop.trf.xlu0
    %v413 = vpop.trf.xlu0
    %v414 = vpop.trf.xlu0
    %v415 = vpop.trf.xlu0
    %v416 = vpop.trf.xlu0
    %v417 = vpop.trf.xlu0
    %v418 = vpop.trf.xlu0
    %v419 = vpop.trf.xlu0
    %v420 = vpop.trf.xlu0
    %v421 = vpop.trf.xlu0
    %v422 = vpop.trf.xlu0
    %v423 = vpop.trf.xlu0
    %v424 = vpop.trf.xlu0
    %v425 = vpop.trf.xlu0
    %v426 = vpop.trf.xlu0
    %v427 = vpop.trf.xlu0
    %vm428 = vcmask 516096
    %429 = vst.msk [vmem:[#allocation4] sm:$0x1] %vm428, %v412
    // Predicated region
    $region14: #{tpu_custom_call.1} parent=1 // pred_check
      _
    $region15: #{tpu_custom_call.1} parent=1 // pred_check_branch
      %431 = sbr.rel (0) target = $region17
    $region16: #{tpu_custom_call.1} parent=1 // pred_region
      %s433 = ssub.s32 16, 16
      %434 = vsyncadd [#allocation3], %s433
      %s436 = sshll.u32 [#allocation2], 4
      %s437 = int_to_ptr.vmem [resolvable:$true] %s436
      %439 = dma.vmem_to_hbm [thread:$0]  %s437, 16, %s3, [#allocation3]
    $region17: #{tpu_custom_call.1} parent=1 // pred_fallthru
      _
    // Predicated region
    $region18: #{tpu_custom_call.1} parent=1 // pred_check
      _
    $region19: #{tpu_custom_call.1} parent=1 // pred_check_branch
      %441 = sbr.rel (0) target = $region21
    $region20: #{tpu_custom_call.1} parent=1 // pred_region
      %s443 = ssub.s32 16, 16
      %444 = vsyncadd [#allocation5], %s443
      %s446 = sshll.u32 [#allocation4], 4
      %s447 = int_to_ptr.vmem [resolvable:$true] %s446
      %449 = dma.vmem_to_hbm [thread:$0]  %s447, 16, %s4, [#allocation5]
    $region21: #{tpu_custom_call.1} parent=1 // pred_fallthru
      _
    // Predicated region
    $region22: #{tpu_custom_call.1} parent=1 // pred_check
      _
    $region23: #{tpu_custom_call.1} parent=1 // pred_check_branch
      %451 = sbr.rel (0) target = $region25
    $region24: #{tpu_custom_call.1} parent=1 // pred_region
      %452 = dma.done [#allocation3], 16
    $region25: #{tpu_custom_call.1} parent=1 // pred_fallthru
      _
    // Predicated region
    $region26: #{tpu_custom_call.1} parent=1 // pred_check
      _
    $region27: #{tpu_custom_call.1} parent=1 // pred_check_branch
      %454 = sbr.rel (0) target = $region29
    $region28: #{tpu_custom_call.1} parent=1 // pred_region
      %455 = dma.done [#allocation5], 16
    $region29: #{tpu_custom_call.1} parent=1 // pred_fallthru
      _
    %456 = vsyncpa [#allocation3], 1
    %457 = vsyncpa [#allocation5], 1

</llo_original>
